<compile_context>
chip_gen: v5e
topology: v5e:2x2
jax: 0.10.0
libtpu: 0.0.40
codegen_flags: <defaults>
</compile_context>

<pallas_src>
import jax
import jax.numpy as jnp
from jax.experimental import pallas as pl
from jax.experimental.pallas import tpu as pltpu

_EPS = 1e-5  # PyTorch BatchNorm1d default eps
_F = 9       # feature width of the module


def mlp_kernel(x_ref, p_ref, o_ref):
    """x_ref: (B, 9)  p_ref: (6, 9, 9)  o_ref: (B, 9).

    p_ref[0..3] = W1..W4 stored (in, out); p_ref[4] = W5 (9,1) zero-padded to
    (9,9); p_ref[5] = vector pack: rows 0..3 gamma1..4, rows 4..7 beta1..4,
    row 8 = b5 broadcast across lanes.  Only column 0 of o_ref is meaningful;
    the wrapper slices it out.
    """
    h = x_ref[...].astype(jnp.float32)
    v = p_ref[5]  # (9, 9) single static slice; row views below are free

    # Four Linear -> BatchNorm(train batch stats) -> ReLU blocks, fully unrolled.
    for i in range(4):
        w = p_ref[i]                     # (9, 9) static first-axis index
        gamma = v[i:i + 1, :]            # (1, 9)
        beta = v[4 + i:5 + i, :]         # (1, 9)
        z = jnp.dot(h, w, preferred_element_type=jnp.float32)
        mu = jnp.mean(z, axis=0, keepdims=True)
        ez2 = jnp.mean(z * z, axis=0, keepdims=True)
        # Biased batch variance, clamped: E[z^2]-mu^2 can go slightly negative
        # from cancellation when the true variance ~ 0, which would NaN rsqrt.
        var = jnp.maximum(ez2 - mu * mu, 0.0)
        s = gamma * jax.lax.rsqrt(var + _EPS)
        h = jnp.maximum(z * s + (beta - mu * s), 0.0)

    # Final Linear(9 -> 1) + ReLU.  W5 is zero-padded so only column 0 of the
    # product is real; b5 (row 8 of v) is broadcast across lanes.  Store the
    # full 9-lane row (lane-dense, unmasked vst); wrapper slices column 0.
    z5 = jnp.dot(h, p_ref[4], preferred_element_type=jnp.float32) + v[8:9, :]
    o_ref[...] = jnp.maximum(z5, 0.0)


def neural_network_forward(x, param_stack):
    B = x.shape[0]
    vmem = pl.BlockSpec(memory_space=pltpu.MemorySpace.VMEM)
    out_pad = pl.pallas_call(
        mlp_kernel,
        out_shape=jax.ShapeDtypeStruct((B, _F), jnp.float32),
        in_specs=[vmem, vmem],
        out_specs=vmem,
    )(x, param_stack)
    return out_pad[:, 0:1]  # (B, 1); slice is free in XLA


def init_params(key):
    """PyTorch-default init.  Returns per-layer tuples (w, b, gamma, beta).

    nn.Linear: weight/bias ~ U(-1/sqrt(fan_in), 1/sqrt(fan_in)); weights stored
    pre-transposed as (in, out).  nn.BatchNorm1d: gamma=1, beta=0.  Biases
    b1..b4 are kept here (and used by the reference) even though the kernel
    omits them, since train-mode BN cancels them exactly.
    """
    dims = [(9, 9), (9, 9), (9, 9), (9, 9), (9, 1)]
    keys = jax.random.split(key, 2 * len(dims))
    layers = []
    for li, (fin, fout) in enumerate(dims):
        bound = 1.0 / (float(fin) ** 0.5)
        w = jax.random.uniform(keys[2 * li], (fin, fout), jnp.float32, -bound, bound)
        b = jax.random.uniform(keys[2 * li + 1], (1, fout), jnp.float32, -bound, bound)
        if li < 4:
            gamma = jnp.ones((1, fout), jnp.float32)
            beta = jnp.zeros((1, fout), jnp.float32)
        else:
            gamma = beta = None
        layers.append((w, b, gamma, beta))
    return layers


def pack_params(layers):
    """Concatenate the 18 small parameter tensors into ONE (6, 9, 9) stack."""
    w5 = layers[4][0]                                   # (9, 1)
    w5_pad = jnp.pad(w5, ((0, 0), (0, _F - 1)))         # (9, 9), cols 1..8 zero

    gammas = jnp.concatenate([layers[i][2] for i in range(4)], axis=0)  # (4, 9)
    betas = jnp.concatenate([layers[i][3] for i in range(4)], axis=0)   # (4, 9)
    b5_row = jnp.broadcast_to(layers[4][1], (1, _F))                    # (1, 9)
    vec_pack = jnp.concatenate([gammas, betas, b5_row], axis=0)         # (9, 9)

    param_stack = jnp.stack(
        [layers[i][0] for i in range(4)] + [w5_pad, vec_pack], axis=0)  # (6, 9, 9)
    return param_stack


def reference_forward(x, layers):
    """Pure-JAX reference mirroring the PyTorch module exactly (incl. b1..b4)."""
    h = x
    for i in range(4):
        w, b, g, be = layers[i]
        z = h @ w + b
        mu = jnp.mean(z, axis=0, keepdims=True)
        var = jnp.mean((z - mu) ** 2, axis=0, keepdims=True)
        z = (z - mu) / jnp.sqrt(var + _EPS) * g + be
        h = jnp.maximum(z, 0.0)
    w5, b5, _, _ = layers[4]
    return jnp.maximum(h @ w5 + b5, 0.0)


if __name__ == "__main__":
    key = jax.random.PRNGKey(0)
    k_x, k_p = jax.random.split(key)

    B = 8  # small batch; feature width 9 per the module definition
    x = jax.random.normal(k_x, (B, _F), dtype=jnp.float32)

    layers = init_params(k_p)
    param_stack = pack_params(layers)

    out = neural_network_forward(x, param_stack)
    out = jax.block_until_ready(out)

    ref = reference_forward(x, layers)
    assert out.shape == (B, 1), out.shape
    # Tolerance covers FP noise from the (exact-in-math) bias cancellation and
    # the clamped E[z^2]-mu^2 variance form across 5 layers.
    assert jnp.allclose(out, ref, atol=1e-4, rtol=1e-4), (out, ref)

    print("KERNEL_OK")
</pallas_src>

<mosaic_0001>
module attributes {stable_mosaic.version = 11 : i64} {
  func.func @mlp_kernel(%arg0: memref<8x9xf32, #tpu.memory_space<vmem>>, %arg1: memref<6x9x9xf32, #tpu.memory_space<vmem>>, %arg2: memref<8x9xf32, #tpu.memory_space<vmem>>) attributes {dimension_semantics = [], scalar_prefetch = 0 : i64, scratch_operands = 0 : i64, tpu.core_type = #tpu.core_type<tc>} {
    %c0 = arith.constant 0 : index
    %c0_0 = arith.constant 0 : index
    %0 = vector.load %arg0[%c0, %c0_0] : memref<8x9xf32, #tpu.memory_space<vmem>>, vector<8x9xf32>
    %c5 = arith.constant 5 : index
    %c0_1 = arith.constant 0 : index
    %c0_2 = arith.constant 0 : index
    %1 = vector.load %arg1[%c5, %c0_1, %c0_2] : memref<6x9x9xf32, #tpu.memory_space<vmem>>, vector<1x9x9xf32>
    %2 = vector.shape_cast %1 : vector<1x9x9xf32> to vector<9x9xf32>
    %c0_3 = arith.constant 0 : index
    %c0_4 = arith.constant 0 : index
    %c0_5 = arith.constant 0 : index
    %3 = vector.load %arg1[%c0_3, %c0_4, %c0_5] : memref<6x9x9xf32, #tpu.memory_space<vmem>>, vector<1x9x9xf32>
    %4 = vector.shape_cast %3 : vector<1x9x9xf32> to vector<9x9xf32>
    %5 = vector.extract_strided_slice %2 {offsets = [0, 0], sizes = [1, 9], strides = [1, 1]} : vector<9x9xf32> to vector<1x9xf32>
    %6 = vector.extract_strided_slice %2 {offsets = [4, 0], sizes = [1, 9], strides = [1, 1]} : vector<9x9xf32> to vector<1x9xf32>
    %cst = arith.constant dense<0.000000e+00> : vector<8x9xf32>
    %7 = tpu.matmul %0, %4, %cst {dimension_numbers = #tpu.dot_dimension_numbers<[1], [0], [0], [1], [0, 0, 1, 1], [], []>} : vector<8x9xf32>, vector<9x9xf32>, vector<8x9xf32> -> vector<8x9xf32>
    %cst_6 = arith.constant dense<0.000000e+00> : vector<9xf32>
    %8 = vector.multi_reduction <add>, %7, %cst_6 [0] : vector<8x9xf32> to vector<9xf32>
    %9 = vector.shape_cast %8 : vector<9xf32> to vector<1x9xf32>
    %cst_7 = arith.constant 8.000000e+00 : f32
    %10 = vector.broadcast %cst_7 : f32 to vector<1x9xf32>
    %11 = arith.divf %9, %10 : vector<1x9xf32>
    %12 = arith.mulf %7, %7 : vector<8x9xf32>
    %cst_8 = arith.constant dense<0.000000e+00> : vector<9xf32>
    %13 = vector.multi_reduction <add>, %12, %cst_8 [0] : vector<8x9xf32> to vector<9xf32>
    %14 = vector.shape_cast %13 : vector<9xf32> to vector<1x9xf32>
    %cst_9 = arith.constant 8.000000e+00 : f32
    %15 = vector.broadcast %cst_9 : f32 to vector<1x9xf32>
    %16 = arith.divf %14, %15 : vector<1x9xf32>
    %17 = arith.mulf %11, %11 : vector<1x9xf32>
    %18 = arith.subf %16, %17 : vector<1x9xf32>
    %cst_10 = arith.constant 0.000000e+00 : f32
    %19 = vector.broadcast %cst_10 : f32 to vector<1x9xf32>
    %20 = arith.maximumf %18, %19 : vector<1x9xf32>
    %cst_11 = arith.constant 9.99999974E-6 : f32
    %21 = vector.broadcast %cst_11 : f32 to vector<1x9xf32>
    %22 = arith.addf %20, %21 : vector<1x9xf32>
    %23 = math.rsqrt %22 : vector<1x9xf32>
    %24 = arith.mulf %5, %23 : vector<1x9xf32>
    %25 = vector.broadcast %24 : vector<1x9xf32> to vector<8x9xf32>
    %26 = arith.mulf %7, %25 : vector<8x9xf32>
    %27 = arith.mulf %11, %24 : vector<1x9xf32>
    %28 = arith.subf %6, %27 : vector<1x9xf32>
    %29 = vector.broadcast %28 : vector<1x9xf32> to vector<8x9xf32>
    %30 = arith.addf %26, %29 : vector<8x9xf32>
    %cst_12 = arith.constant 0.000000e+00 : f32
    %31 = vector.broadcast %cst_12 : f32 to vector<8x9xf32>
    %32 = arith.maximumf %30, %31 : vector<8x9xf32>
    %c1 = arith.constant 1 : index
    %c0_13 = arith.constant 0 : index
    %c0_14 = arith.constant 0 : index
    %33 = vector.load %arg1[%c1, %c0_13, %c0_14] : memref<6x9x9xf32, #tpu.memory_space<vmem>>, vector<1x9x9xf32>
    %34 = vector.shape_cast %33 : vector<1x9x9xf32> to vector<9x9xf32>
    %35 = vector.extract_strided_slice %2 {offsets = [1, 0], sizes = [1, 9], strides = [1, 1]} : vector<9x9xf32> to vector<1x9xf32>
    %36 = vector.extract_strided_slice %2 {offsets = [5, 0], sizes = [1, 9], strides = [1, 1]} : vector<9x9xf32> to vector<1x9xf32>
    %cst_15 = arith.constant dense<0.000000e+00> : vector<8x9xf32>
    %37 = tpu.matmul %32, %34, %cst_15 {dimension_numbers = #tpu.dot_dimension_numbers<[1], [0], [0], [1], [0, 0, 1, 1], [], []>} : vector<8x9xf32>, vector<9x9xf32>, vector<8x9xf32> -> vector<8x9xf32>
    %cst_16 = arith.constant dense<0.000000e+00> : vector<9xf32>
    %38 = vector.multi_reduction <add>, %37, %cst_16 [0] : vector<8x9xf32> to vector<9xf32>
    %39 = vector.shape_cast %38 : vector<9xf32> to vector<1x9xf32>
    %cst_17 = arith.constant 8.000000e+00 : f32
    %40 = vector.broadcast %cst_17 : f32 to vector<1x9xf32>
    %41 = arith.divf %39, %40 : vector<1x9xf32>
    %42 = arith.mulf %37, %37 : vector<8x9xf32>
    %cst_18 = arith.constant dense<0.000000e+00> : vector<9xf32>
    %43 = vector.multi_reduction <add>, %42, %cst_18 [0] : vector<8x9xf32> to vector<9xf32>
    %44 = vector.shape_cast %43 : vector<9xf32> to vector<1x9xf32>
    %cst_19 = arith.constant 8.000000e+00 : f32
    %45 = vector.broadcast %cst_19 : f32 to vector<1x9xf32>
    %46 = arith.divf %44, %45 : vector<1x9xf32>
    %47 = arith.mulf %41, %41 : vector<1x9xf32>
    %48 = arith.subf %46, %47 : vector<1x9xf32>
    %cst_20 = arith.constant 0.000000e+00 : f32
    %49 = vector.broadcast %cst_20 : f32 to vector<1x9xf32>
    %50 = arith.maximumf %48, %49 : vector<1x9xf32>
    %cst_21 = arith.constant 9.99999974E-6 : f32
    %51 = vector.broadcast %cst_21 : f32 to vector<1x9xf32>
    %52 = arith.addf %50, %51 : vector<1x9xf32>
    %53 = math.rsqrt %52 : vector<1x9xf32>
    %54 = arith.mulf %35, %53 : vector<1x9xf32>
    %55 = vector.broadcast %54 : vector<1x9xf32> to vector<8x9xf32>
    %56 = arith.mulf %37, %55 : vector<8x9xf32>
    %57 = arith.mulf %41, %54 : vector<1x9xf32>
    %58 = arith.subf %36, %57 : vector<1x9xf32>
    %59 = vector.broadcast %58 : vector<1x9xf32> to vector<8x9xf32>
    %60 = arith.addf %56, %59 : vector<8x9xf32>
    %cst_22 = arith.constant 0.000000e+00 : f32
    %61 = vector.broadcast %cst_22 : f32 to vector<8x9xf32>
    %62 = arith.maximumf %60, %61 : vector<8x9xf32>
    %c2 = arith.constant 2 : index
    %c0_23 = arith.constant 0 : index
    %c0_24 = arith.constant 0 : index
    %63 = vector.load %arg1[%c2, %c0_23, %c0_24] : memref<6x9x9xf32, #tpu.memory_space<vmem>>, vector<1x9x9xf32>
    %64 = vector.shape_cast %63 : vector<1x9x9xf32> to vector<9x9xf32>
    %65 = vector.extract_strided_slice %2 {offsets = [2, 0], sizes = [1, 9], strides = [1, 1]} : vector<9x9xf32> to vector<1x9xf32>
    %66 = vector.extract_strided_slice %2 {offsets = [6, 0], sizes = [1, 9], strides = [1, 1]} : vector<9x9xf32> to vector<1x9xf32>
    %cst_25 = arith.constant dense<0.000000e+00> : vector<8x9xf32>
    %67 = tpu.matmul %62, %64, %cst_25 {dimension_numbers = #tpu.dot_dimension_numbers<[1], [0], [0], [1], [0, 0, 1, 1], [], []>} : vector<8x9xf32>, vector<9x9xf32>, vector<8x9xf32> -> vector<8x9xf32>
    %cst_26 = arith.constant dense<0.000000e+00> : vector<9xf32>
    %68 = vector.multi_reduction <add>, %67, %cst_26 [0] : vector<8x9xf32> to vector<9xf32>
    %69 = vector.shape_cast %68 : vector<9xf32> to vector<1x9xf32>
    %cst_27 = arith.constant 8.000000e+00 : f32
    %70 = vector.broadcast %cst_27 : f32 to vector<1x9xf32>
    %71 = arith.divf %69, %70 : vector<1x9xf32>
    %72 = arith.mulf %67, %67 : vector<8x9xf32>
    %cst_28 = arith.constant dense<0.000000e+00> : vector<9xf32>
    %73 = vector.multi_reduction <add>, %72, %cst_28 [0] : vector<8x9xf32> to vector<9xf32>
    %74 = vector.shape_cast %73 : vector<9xf32> to vector<1x9xf32>
    %cst_29 = arith.constant 8.000000e+00 : f32
    %75 = vector.broadcast %cst_29 : f32 to vector<1x9xf32>
    %76 = arith.divf %74, %75 : vector<1x9xf32>
    %77 = arith.mulf %71, %71 : vector<1x9xf32>
    %78 = arith.subf %76, %77 : vector<1x9xf32>
    %cst_30 = arith.constant 0.000000e+00 : f32
    %79 = vector.broadcast %cst_30 : f32 to vector<1x9xf32>
    %80 = arith.maximumf %78, %79 : vector<1x9xf32>
    %cst_31 = arith.constant 9.99999974E-6 : f32
    %81 = vector.broadcast %cst_31 : f32 to vector<1x9xf32>
    %82 = arith.addf %80, %81 : vector<1x9xf32>
    %83 = math.rsqrt %82 : vector<1x9xf32>
    %84 = arith.mulf %65, %83 : vector<1x9xf32>
    %85 = vector.broadcast %84 : vector<1x9xf32> to vector<8x9xf32>
    %86 = arith.mulf %67, %85 : vector<8x9xf32>
    %87 = arith.mulf %71, %84 : vector<1x9xf32>
    %88 = arith.subf %66, %87 : vector<1x9xf32>
    %89 = vector.broadcast %88 : vector<1x9xf32> to vector<8x9xf32>
    %90 = arith.addf %86, %89 : vector<8x9xf32>
    %cst_32 = arith.constant 0.000000e+00 : f32
    %91 = vector.broadcast %cst_32 : f32 to vector<8x9xf32>
    %92 = arith.maximumf %90, %91 : vector<8x9xf32>
    %c3 = arith.constant 3 : index
    %c0_33 = arith.constant 0 : index
    %c0_34 = arith.constant 0 : index
    %93 = vector.load %arg1[%c3, %c0_33, %c0_34] : memref<6x9x9xf32, #tpu.memory_space<vmem>>, vector<1x9x9xf32>
    %94 = vector.shape_cast %93 : vector<1x9x9xf32> to vector<9x9xf32>
    %95 = vector.extract_strided_slice %2 {offsets = [3, 0], sizes = [1, 9], strides = [1, 1]} : vector<9x9xf32> to vector<1x9xf32>
    %96 = vector.extract_strided_slice %2 {offsets = [7, 0], sizes = [1, 9], strides = [1, 1]} : vector<9x9xf32> to vector<1x9xf32>
    %cst_35 = arith.constant dense<0.000000e+00> : vector<8x9xf32>
    %97 = tpu.matmul %92, %94, %cst_35 {dimension_numbers = #tpu.dot_dimension_numbers<[1], [0], [0], [1], [0, 0, 1, 1], [], []>} : vector<8x9xf32>, vector<9x9xf32>, vector<8x9xf32> -> vector<8x9xf32>
    %cst_36 = arith.constant dense<0.000000e+00> : vector<9xf32>
    %98 = vector.multi_reduction <add>, %97, %cst_36 [0] : vector<8x9xf32> to vector<9xf32>
    %99 = vector.shape_cast %98 : vector<9xf32> to vector<1x9xf32>
    %cst_37 = arith.constant 8.000000e+00 : f32
    %100 = vector.broadcast %cst_37 : f32 to vector<1x9xf32>
    %101 = arith.divf %99, %100 : vector<1x9xf32>
    %102 = arith.mulf %97, %97 : vector<8x9xf32>
    %cst_38 = arith.constant dense<0.000000e+00> : vector<9xf32>
    %103 = vector.multi_reduction <add>, %102, %cst_38 [0] : vector<8x9xf32> to vector<9xf32>
    %104 = vector.shape_cast %103 : vector<9xf32> to vector<1x9xf32>
    %cst_39 = arith.constant 8.000000e+00 : f32
    %105 = vector.broadcast %cst_39 : f32 to vector<1x9xf32>
    %106 = arith.divf %104, %105 : vector<1x9xf32>
    %107 = arith.mulf %101, %101 : vector<1x9xf32>
    %108 = arith.subf %106, %107 : vector<1x9xf32>
    %cst_40 = arith.constant 0.000000e+00 : f32
    %109 = vector.broadcast %cst_40 : f32 to vector<1x9xf32>
    %110 = arith.maximumf %108, %109 : vector<1x9xf32>
    %cst_41 = arith.constant 9.99999974E-6 : f32
    %111 = vector.broadcast %cst_41 : f32 to vector<1x9xf32>
    %112 = arith.addf %110, %111 : vector<1x9xf32>
    %113 = math.rsqrt %112 : vector<1x9xf32>
    %114 = arith.mulf %95, %113 : vector<1x9xf32>
    %115 = vector.broadcast %114 : vector<1x9xf32> to vector<8x9xf32>
    %116 = arith.mulf %97, %115 : vector<8x9xf32>
    %117 = arith.mulf %101, %114 : vector<1x9xf32>
    %118 = arith.subf %96, %117 : vector<1x9xf32>
    %119 = vector.broadcast %118 : vector<1x9xf32> to vector<8x9xf32>
    %120 = arith.addf %116, %119 : vector<8x9xf32>
    %cst_42 = arith.constant 0.000000e+00 : f32
    %121 = vector.broadcast %cst_42 : f32 to vector<8x9xf32>
    %122 = arith.maximumf %120, %121 : vector<8x9xf32>
    %c4 = arith.constant 4 : index
    %c0_43 = arith.constant 0 : index
    %c0_44 = arith.constant 0 : index
    %123 = vector.load %arg1[%c4, %c0_43, %c0_44] : memref<6x9x9xf32, #tpu.memory_space<vmem>>, vector<1x9x9xf32>
    %124 = vector.shape_cast %123 : vector<1x9x9xf32> to vector<9x9xf32>
    %cst_45 = arith.constant dense<0.000000e+00> : vector<8x9xf32>
    %125 = tpu.matmul %122, %124, %cst_45 {dimension_numbers = #tpu.dot_dimension_numbers<[1], [0], [0], [1], [0, 0, 1, 1], [], []>} : vector<8x9xf32>, vector<9x9xf32>, vector<8x9xf32> -> vector<8x9xf32>
    %126 = vector.extract_strided_slice %2 {offsets = [8, 0], sizes = [1, 9], strides = [1, 1]} : vector<9x9xf32> to vector<1x9xf32>
    %127 = vector.broadcast %126 : vector<1x9xf32> to vector<8x9xf32>
    %128 = arith.addf %125, %127 : vector<8x9xf32>
    %cst_46 = arith.constant 0.000000e+00 : f32
    %129 = vector.broadcast %cst_46 : f32 to vector<8x9xf32>
    %130 = arith.maximumf %128, %129 : vector<8x9xf32>
    %c0_47 = arith.constant 0 : index
    %c0_48 = arith.constant 0 : index
    %131 = vector.load %arg2[%c0_47, %c0_48] : memref<8x9xf32, #tpu.memory_space<vmem>>, vector<8x9xf32>
    tpu.vector_store %arg2[%c0_47, %c0_48], %130 {strides = array<i32>} : memref<8x9xf32, #tpu.memory_space<vmem>>, vector<8x9xf32>,
    return
  }
}

</mosaic_0001>

<llo_original>
// kernel: tpu_custom_call.1
$region0: #{tpu_custom_call.1}
  #allocation0 [shape = 'u32[]', space=smem, size = 0x4, offset = 0x4, fixed_abs, tag = 'smem constant byte address 0x4 - core index']
  #allocation1 [shape = 'u32[72,128]{1,0:T(1,128)}', space=vmem, size = 0x9000, scoped, tag = 'internal scratch']
  %s0 = inlined_call_operand.vmem [shape: f32[8,9], index: 0, kind: input, shape index: {}]
  %s1 = inlined_call_operand.vmem [shape: f32[6,9,9], index: 1, kind: input, shape index: {}]
  %s2 = inlined_call_operand.hbm [shape: f32[8,9], index: 2, kind: output, shape index: {}]
  %s3 = sld [smem:[#allocation0]]
  $region18: #{tpu_custom_call.1} parent=0
    _
  %s5 = ssub.s32 1, %s3
  %s6 = scalar_select 0, %s5, %s3
  $region1: #{tpu_custom_call.1} parent=0
    #allocation2 [shape = 'u8[4096]{0}', space=vmem, size = 0x1000, scoped, tag = 'output window, operand 0, single buffered']
    #allocation3 [shape = 's32[1]{0}', space=sflag, size = 0x4, scoped, tag = 'scoped memory for tpu_custom_call.1']
    %7 = vsyncpa [#allocation3], 0
    // Predicated region
    $region2: #{tpu_custom_call.1} parent=1 // pred_check
      _
    $region3: #{tpu_custom_call.1} parent=1 // pred_check_branch
      %9 = sbr.rel (0) target = $region5
    $region4: #{tpu_custom_call.1} parent=1 // pred_region
      _
    $region5: #{tpu_custom_call.1} parent=1 // pred_fallthru
      _
    // Predicated region
    $region6: #{tpu_custom_call.1} parent=1 // pred_check
      _
    $region7: #{tpu_custom_call.1} parent=1 // pred_check_branch
      %11 = sbr.rel (0) target = $region9
    $region8: #{tpu_custom_call.1} parent=1 // pred_region
      _
    $region9: #{tpu_custom_call.1} parent=1 // pred_fallthru
      _
    %v12 = vld [vmem:[%s0] sm:$0xff]
    %s13 = scalar_lea.vmem %s1, 80
    %v14 = vld [vmem:[%s13] sm:$0xff]
    %v15 = vld [vmem:[%s13 + $0x8] sm:$0x1]
    %v16 = vld [vmem:[%s1] sm:$0xff]
    %v17 = vld [vmem:[%s1 + $0x8] sm:$0x1]
    %vm18 = vcmask 72704
    %v20 = vsel %vm18, %v12, 0
    %vm22 = vcmask 1040384
    %v24 = vsel %vm22, %v17, 0
    %26 = vmatpush.msra.mxu0 0.0
    %27 = vmatpush.msra.mxu0 0.0
    %28 = vmatpush.msra.mxu0 0.0
    %29 = vmatpush.msra.mxu0 0.0
    %30 = vmatpush.msra.mxu0 0.0
    %31 = vmatpush.msra.mxu0 0.0
    %32 = vmatpush.msra.mxu0 0.0
    %33 = vmatpush.msra.mxu0 0.0
    %34 = vmatpush.msra.mxu0 0.0
    %35 = vmatpush.msra.mxu0 0.0
    %36 = vmatpush.msra.mxu0 0.0
    %37 = vmatpush.msra.mxu0 0.0
    %38 = vmatpush.msra.mxu0 0.0
    %39 = vmatpush.msra.mxu0 0.0
    %40 = vmatpush.msra.mxu0 %v24
    %41 = vmatpush.msra.mxu0 %v16
    %42 = vmatmul.f32.gmra.mxu0 %v20
    %v43 = vpop.f32.mrf.mxu0
    %v44 = vadd.f32 0.0, %v43
    %45 = vdwg.mxu0
    %v46 = vsel %vm18, %v44, 0.0
    %v47 = vrot.slane %v46, 4
    %v48 = vadd.f32 %v46, %v47
    %v49 = vrot.slane %v48, 2
    %v50 = vadd.f32 %v48, %v49
    %v51 = vrot.slane %v50, 1
    %v52 = vadd.f32 %v50, %v51
    %v53 = vrcp.pop 8.0
    %v54 = vmul.f32 8.0, %v53
    %v55 = vsub.f32 1.0, %v54
    %v56 = vmul.f32 %v53, %v55
    %v57 = vadd.f32 %v53, %v56
    %vm58 = vweird.f32 %v53
    %v59 = vsel %vm58, %v53, %v57
    %v60 = vmul.f32 %v52, %v59
    %v61 = vmul.f32 %v44, %v44
    %v62 = vsel %vm18, %v61, 0.0
    %v63 = vrot.slane %v62, 4
    %v64 = vadd.f32 %v62, %v63
    %v65 = vrot.slane %v64, 2
    %v66 = vadd.f32 %v64, %v65
    %v67 = vrot.slane %v66, 1
    %v68 = vadd.f32 %v66, %v67
    %v69 = vmul.f32 %v68, %v59
    %v70 = vmul.f32 %v60, %v60
    %v71 = vsub.f32 %v69, %v70
    %v72 = vmax.f32 %v71, 0.0
    %v73 = vadd.f32 %v72, 1e-05
    %v74 = vrsqrt.pop %v73
    %v75 = vmul.f32 %v74, %v73
    %v76 = vmul.f32 %v75, %v74
    %v77 = vmul.f32 0.5, %v76
    %v78 = vsub.f32 1.5, %v77
    %v79 = vmul.f32 %v74, %v78
    %vm80 = vweird.f32 %v73
    %vm81 = vweird.f32 %v74
    %vm82 = vmor %vm80, %vm81
    %v83 = vsel %vm82, %v74, %v79
    %v84 = vmul.f32 %v14, %v83
    %v85 = vperm.slane %v84, 0
    %v86 = vmul.f32 %v44, %v85
    %v87 = vmul.f32 %v60, %v84
    %v89 = vrot.slane %v87, 4
    %v91 = vsub.f32 %v14, %v89
    %v92 = vperm.slane %v91, 4
    %v93 = vadd.f32 %v86, %v92
    %v94 = vmax.f32 %v93, 0.0
    %s95 = scalar_lea.vmem %s1, 16
    %v96 = vld [vmem:[%s95] sm:$0xff]
    %v97 = vld [vmem:[%s95 + $0x8] sm:$0x1]
    %v99 = vsel %vm18, %v94, 0
    %v102 = vsel %vm22, %v97, 0
    %104 = vmatpush.msra.mxu0 0.0
    %105 = vmatpush.msra.mxu0 0.0
    %106 = vmatpush.msra.mxu0 0.0
    %107 = vmatpush.msra.mxu0 0.0
    %108 = vmatpush.msra.mxu0 0.0
    %109 = vmatpush.msra.mxu0 0.0
    %110 = vmatpush.msra.mxu0 0.0
    %111 = vmatpush.msra.mxu0 0.0
    %112 = vmatpush.msra.mxu0 0.0
    %113 = vmatpush.msra.mxu0 0.0
    %114 = vmatpush.msra.mxu0 0.0
    %115 = vmatpush.msra.mxu0 0.0
    %116 = vmatpush.msra.mxu0 0.0
    %117 = vmatpush.msra.mxu0 0.0
    %118 = vmatpush.msra.mxu0 %v102
    %119 = vmatpush.msra.mxu0 %v96
    %120 = vmatmul.f32.gmra.mxu0 %v99
    %v121 = vpop.f32.mrf.mxu0
    %v122 = vadd.f32 0.0, %v121
    %123 = vdwg.mxu0
    %v124 = vsel %vm18, %v122, 0.0
    %v125 = vrot.slane %v124, 4
    %v126 = vadd.f32 %v124, %v125
    %v127 = vrot.slane %v126, 2
    %v128 = vadd.f32 %v126, %v127
    %v129 = vrot.slane %v128, 1
    %v130 = vadd.f32 %v128, %v129
    %v131 = vmul.f32 %v130, %v59
    %v132 = vmul.f32 %v122, %v122
    %v133 = vsel %vm18, %v132, 0.0
    %v134 = vrot.slane %v133, 4
    %v135 = vadd.f32 %v133, %v134
    %v136 = vrot.slane %v135, 2
    %v137 = vadd.f32 %v135, %v136
    %v138 = vrot.slane %v137, 1
    %v139 = vadd.f32 %v137, %v138
    %v140 = vmul.f32 %v139, %v59
    %v141 = vmul.f32 %v131, %v131
    %v142 = vsub.f32 %v140, %v141
    %v143 = vmax.f32 %v142, 0.0
    %v144 = vadd.f32 %v143, 1e-05
    %v145 = vrsqrt.pop %v144
    %v146 = vmul.f32 %v145, %v144
    %v147 = vmul.f32 %v146, %v145
    %v148 = vmul.f32 0.5, %v147
    %v149 = vsub.f32 1.5, %v148
    %v150 = vmul.f32 %v145, %v149
    %vm151 = vweird.f32 %v144
    %vm152 = vweird.f32 %v145
    %vm153 = vmor %vm151, %vm152
    %v154 = vsel %vm153, %v145, %v150
    %v155 = vmul.f32 %v14, %v154
    %v156 = vperm.slane %v155, 1
    %v157 = vmul.f32 %v122, %v156
    %v158 = vmul.f32 %v131, %v155
    %v160 = vrot.slane %v158, 4
    %v162 = vsub.f32 %v14, %v160
    %v163 = vperm.slane %v162, 5
    %v164 = vadd.f32 %v157, %v163
    %v165 = vmax.f32 %v164, 0.0
    %s166 = scalar_lea.vmem %s1, 32
    %v167 = vld [vmem:[%s166] sm:$0xff]
    %v168 = vld [vmem:[%s166 + $0x8] sm:$0x1]
    %v170 = vsel %vm18, %v165, 0
    %v173 = vsel %vm22, %v168, 0
    %175 = vmatpush.msra.mxu0 0.0
    %176 = vmatpush.msra.mxu0 0.0
    %177 = vmatpush.msra.mxu0 0.0
    %178 = vmatpush.msra.mxu0 0.0
    %179 = vmatpush.msra.mxu0 0.0
    %180 = vmatpush.msra.mxu0 0.0
    %181 = vmatpush.msra.mxu0 0.0
    %182 = vmatpush.msra.mxu0 0.0
    %183 = vmatpush.msra.mxu0 0.0
    %184 = vmatpush.msra.mxu0 0.0
    %185 = vmatpush.msra.mxu0 0.0
    %186 = vmatpush.msra.mxu0 0.0
    %187 = vmatpush.msra.mxu0 0.0
    %188 = vmatpush.msra.mxu0 0.0
    %189 = vmatpush.msra.mxu0 %v173
    %190 = vmatpush.msra.mxu0 %v167
    %191 = vmatmul.f32.gmra.mxu0 %v170
    %v192 = vpop.f32.mrf.mxu0
    %v193 = vadd.f32 0.0, %v192
    %194 = vdwg.mxu0
    %v195 = vsel %vm18, %v193, 0.0
    %v196 = vrot.slane %v195, 4
    %v197 = vadd.f32 %v195, %v196
    %v198 = vrot.slane %v197, 2
    %v199 = vadd.f32 %v197, %v198
    %v200 = vrot.slane %v199, 1
    %v201 = vadd.f32 %v199, %v200
    %v202 = vmul.f32 %v201, %v59
    %v203 = vmul.f32 %v193, %v193
    %v204 = vsel %vm18, %v203, 0.0
    %v205 = vrot.slane %v204, 4
    %v206 = vadd.f32 %v204, %v205
    %v207 = vrot.slane %v206, 2
    %v208 = vadd.f32 %v206, %v207
    %v209 = vrot.slane %v208, 1
    %v210 = vadd.f32 %v208, %v209
    %v211 = vmul.f32 %v210, %v59
    %v212 = vmul.f32 %v202, %v202
    %v213 = vsub.f32 %v211, %v212
    %v214 = vmax.f32 %v213, 0.0
    %v215 = vadd.f32 %v214, 1e-05
    %v216 = vrsqrt.pop %v215
    %v217 = vmul.f32 %v216, %v215
    %v218 = vmul.f32 %v217, %v216
    %v219 = vmul.f32 0.5, %v218
    %v220 = vsub.f32 1.5, %v219
    %v221 = vmul.f32 %v216, %v220
    %vm222 = vweird.f32 %v215
    %vm223 = vweird.f32 %v216
    %vm224 = vmor %vm222, %vm223
    %v225 = vsel %vm224, %v216, %v221
    %v226 = vmul.f32 %v14, %v225
    %v227 = vperm.slane %v226, 2
    %v228 = vmul.f32 %v193, %v227
    %v229 = vmul.f32 %v202, %v226
    %v231 = vrot.slane %v229, 4
    %v233 = vsub.f32 %v14, %v231
    %v234 = vperm.slane %v233, 6
    %v235 = vadd.f32 %v228, %v234
    %v236 = vmax.f32 %v235, 0.0
    %s237 = scalar_lea.vmem %s1, 48
    %v238 = vld [vmem:[%s237] sm:$0xff]
    %v239 = vld [vmem:[%s237 + $0x8] sm:$0x1]
    %v241 = vsel %vm18, %v236, 0
    %v244 = vsel %vm22, %v239, 0
    %246 = vmatpush.msra.mxu0 0.0
    %247 = vmatpush.msra.mxu0 0.0
    %248 = vmatpush.msra.mxu0 0.0
    %249 = vmatpush.msra.mxu0 0.0
    %250 = vmatpush.msra.mxu0 0.0
    %251 = vmatpush.msra.mxu0 0.0
    %252 = vmatpush.msra.mxu0 0.0
    %253 = vmatpush.msra.mxu0 0.0
    %254 = vmatpush.msra.mxu0 0.0
    %255 = vmatpush.msra.mxu0 0.0
    %256 = vmatpush.msra.mxu0 0.0
    %257 = vmatpush.msra.mxu0 0.0
    %258 = vmatpush.msra.mxu0 0.0
    %259 = vmatpush.msra.mxu0 0.0
    %260 = vmatpush.msra.mxu0 %v244
    %261 = vmatpush.msra.mxu0 %v238
    %262 = vmatmul.f32.gmra.mxu0 %v241
    %v263 = vpop.f32.mrf.mxu0
    %v264 = vadd.f32 0.0, %v263
    %265 = vdwg.mxu0
    %v266 = vsel %vm18, %v264, 0.0
    %v267 = vrot.slane %v266, 4
    %v268 = vadd.f32 %v266, %v267
    %v269 = vrot.slane %v268, 2
    %v270 = vadd.f32 %v268, %v269
    %v271 = vrot.slane %v270, 1
    %v272 = vadd.f32 %v270, %v271
    %v273 = vmul.f32 %v272, %v59
    %v274 = vmul.f32 %v264, %v264
    %v275 = vsel %vm18, %v274, 0.0
    %v276 = vrot.slane %v275, 4
    %v277 = vadd.f32 %v275, %v276
    %v278 = vrot.slane %v277, 2
    %v279 = vadd.f32 %v277, %v278
    %v280 = vrot.slane %v279, 1
    %v281 = vadd.f32 %v279, %v280
    %v282 = vmul.f32 %v281, %v59
    %v283 = vmul.f32 %v273, %v273
    %v284 = vsub.f32 %v282, %v283
    %v285 = vmax.f32 %v284, 0.0
    %v286 = vadd.f32 %v285, 1e-05
    %v287 = vrsqrt.pop %v286
    %v288 = vmul.f32 %v287, %v286
    %v289 = vmul.f32 %v288, %v287
    %v290 = vmul.f32 0.5, %v289
    %v291 = vsub.f32 1.5, %v290
    %v292 = vmul.f32 %v287, %v291
    %vm293 = vweird.f32 %v286
    %vm294 = vweird.f32 %v287
    %vm295 = vmor %vm293, %vm294
    %v296 = vsel %vm295, %v287, %v292
    %v297 = vmul.f32 %v14, %v296
    %v298 = vperm.slane %v297, 3
    %v299 = vmul.f32 %v264, %v298
    %v300 = vmul.f32 %v273, %v297
    %v302 = vrot.slane %v300, 4
    %v304 = vsub.f32 %v14, %v302
    %v305 = vperm.slane %v304, 7
    %v306 = vadd.f32 %v299, %v305
    %v307 = vmax.f32 %v306, 0.0
    %s308 = scalar_lea.vmem %s1, 64
    %v309 = vld [vmem:[%s308] sm:$0xff]
    %v310 = vld [vmem:[%s308 + $0x8] sm:$0x1]
    %v311 = vperm.slane %v15, 0
    %v313 = vsel %vm18, %v307, 0
    %v316 = vsel %vm22, %v310, 0
    %318 = vmatpush.msra.mxu0 0.0
    %319 = vmatpush.msra.mxu0 0.0
    %320 = vmatpush.msra.mxu0 0.0
    %321 = vmatpush.msra.mxu0 0.0
    %322 = vmatpush.msra.mxu0 0.0
    %323 = vmatpush.msra.mxu0 0.0
    %324 = vmatpush.msra.mxu0 0.0
    %325 = vmatpush.msra.mxu0 0.0
    %326 = vmatpush.msra.mxu0 0.0
    %327 = vmatpush.msra.mxu0 0.0
    %328 = vmatpush.msra.mxu0 0.0
    %329 = vmatpush.msra.mxu0 0.0
    %330 = vmatpush.msra.mxu0 0.0
    %331 = vmatpush.msra.mxu0 0.0
    %332 = vmatpush.msra.mxu0 %v316
    %333 = vmatpush.msra.mxu0 %v309
    %334 = vmatmul.f32.gmra.mxu0 %v313
    %v335 = vpop.f32.mrf.mxu0
    %v336 = vadd.f32 %v311, %v335
    %337 = vdwg.mxu0
    %v338 = vmax.f32 %v336, 0.0
    %339 = vst.msk [vmem:[#allocation2] sm:$0xff] %vm18, %v338
    // Predicated region
    $region10: #{tpu_custom_call.1} parent=1 // pred_check
      _
    $region11: #{tpu_custom_call.1} parent=1 // pred_check_branch
      %341 = sbr.rel (0) target = $region13
    $region12: #{tpu_custom_call.1} parent=1 // pred_region
      %343 = vsyncadd [#allocation3], 0
      %s345 = sshll.u32 [#allocation2], 4
      %s346 = int_to_ptr.vmem [resolvable:$true] %s345
      %s347 = sshll.u32 %s2, 4
      %s348 = int_to_ptr.hbm [resolvable:$true] %s347
      %350 = dma.vmem_to_hbm [thread:$0]  %s346, 128, %s348, [#allocation3]
    $region13: #{tpu_custom_call.1} parent=1 // pred_fallthru
      _
    // Predicated region
    $region14: #{tpu_custom_call.1} parent=1 // pred_check
      _
    $region15: #{tpu_custom_call.1} parent=1 // pred_check_branch
      %352 = sbr.rel (0) target = $region17
    $region16: #{tpu_custom_call.1} parent=1 // pred_region
      %354 = dma.done [#allocation3], 128
    $region17: #{tpu_custom_call.1} parent=1 // pred_fallthru
      _
    %355 = vsyncpa [#allocation3], 1

</llo_original>
